<compile_context>
chip_gen: v7x
topology: tpu7x:2x2x1
jax: 0.10.0
libtpu: 0.0.40
codegen_flags: <defaults>
</compile_context>

<pallas_src>
import math
import dataclasses

import jax
import jax.numpy as jnp
from jax.experimental import pallas as pl
from jax.experimental.pallas import tpu as pltpu


def _round_up(v, m):
    return ((v + m - 1) // m) * m


def _pick_tile(total, requested, unit):
    """Largest multiple of `unit` <= requested that divides `total` (total % unit == 0)."""
    t = min(_round_up(max(requested, unit), unit), total)
    t = max(unit, (t // unit) * unit)
    while total % t:
        t -= unit
    return t


def _vmem_capacity_bytes():
    try:
        return int(pltpu.get_tpu_info().vmem_capacity_bytes)
    except Exception:
        return 64 << 20  # conservative fallback (v7x-sized)


# ----------------------------------------------------------------------------- kernel

def _linear_lora_kernel(x_ref, wt_ref, xa_ref, b_ref, bias_ref, o_ref, acc_ref):
    """Grid (i rows, j out-cols, k reduction). acc_ref: (tm, tn) f32 scratch."""
    k = pl.program_id(2)

    @pl.when(k == 0)
    def _init():
        acc_ref[...] = jnp.zeros_like(acc_ref)

    # Base linear partial sum for this K slice: (tm, tk) @ (tk, tn), f32 MXU acc.
    acc_ref[...] += jnp.dot(x_ref[...], wt_ref[...],
                            preferred_element_type=jnp.float32)

    @pl.when(k == pl.num_programs(2) - 1)
    def _finalize():
        # LoRA up-projection once per output tile: xa is f32 (alpha already folded
        # into B at prep time), B tile upcast to f32 -> fully-f32 LoRA branch.
        lora = jnp.dot(xa_ref[...], b_ref[...].astype(jnp.float32),
                       preferred_element_type=jnp.float32)
        out = acc_ref[...] + lora + bias_ref[...]
        o_ref[...] = out.astype(o_ref.dtype)


# ----------------------------------------------------------------------------- wrapper

@dataclasses.dataclass(frozen=True)
class PreparedLoRALinear:
    wt: jax.Array     # (k_pad, n_pad), compute dtype: padded W^T (built once)
    bias: jax.Array   # (1, n_pad), f32
    A: jax.Array      # (in_dim, rank), f32 (for the per-call x@A pre-pass)
    Bs: jax.Array     # (r_pad, n_pad), compute dtype: padded alpha*B
    in_dim: int
    out_dim: int
    rank: int
    k_pad: int
    n_pad: int
    r_pad: int
    tn: int
    tk: int
    cdt: jnp.dtype


def prepare_linear_lora_params(W, bias, A, B, alpha, *, compute_dtype=None,
                               tn=None, tk=512):
    """One-time weight prep: transpose/pad/cast W, pad B (alpha folded in)."""
    out_dim, in_dim = W.shape
    rank = A.shape[1]
    cdt = jnp.dtype(compute_dtype) if compute_dtype is not None else jnp.dtype(W.dtype)

    k_pad = _round_up(in_dim, 128)
    n_pad = _round_up(out_dim, 128)
    r_pad = _round_up(rank, 128)

    if tn is None:
        # Bigger column tiles where VMEM allows (v5e/v6e: 128 MiB; v7x: 64 MiB).
        tn = 2048 if _vmem_capacity_bytes() > (64 << 20) else 1024
    tn = _pick_tile(n_pad, tn, 128)
    tk = _pick_tile(k_pad, tk, 128)

    wt = jnp.pad(W.T, ((0, k_pad - in_dim), (0, n_pad - out_dim))).astype(cdt)
    bp = jnp.pad(bias.astype(jnp.float32), (0, n_pad - out_dim)).reshape(1, n_pad)
    Af = A.astype(jnp.float32)
    Bs = jnp.pad(alpha * B.astype(jnp.float32),
                 ((0, r_pad - rank), (0, n_pad - out_dim))).astype(cdt)

    return PreparedLoRALinear(wt=wt, bias=bp, A=Af, Bs=Bs, in_dim=in_dim,
                              out_dim=out_dim, rank=rank, k_pad=k_pad,
                              n_pad=n_pad, r_pad=r_pad, tn=tn, tk=tk, cdt=cdt)


def linear_with_lora_forward(x, params, *, tm=512, out_dtype=None):
    """out = x @ W^T + bias + alpha * (x @ A @ B), with pre-prepared weights."""
    p = params
    orig_shape = x.shape
    assert orig_shape[-1] == p.in_dim
    out_dtype = jnp.dtype(out_dtype) if out_dtype is not None else x.dtype

    x2d = x.reshape(-1, p.in_dim)
    M = x2d.shape[0]
    tm = max(8, min(_round_up(tm, 8), _round_up(M, 8)))
    m_pad = _round_up(M, tm)

    # Tiny LoRA down-projection pre-pass (full f32): done once per call instead of
    # once per (row, col) tile inside the kernel.  alpha already folded into Bs.
    xa = jnp.dot(x2d.astype(jnp.float32), p.A,
                 preferred_element_type=jnp.float32,
                 precision=jax.lax.Precision.HIGHEST)
    xa = jnp.pad(xa, ((0, m_pad - M), (0, p.r_pad - p.rank)))

    # Activation padding (zeros -> exact results; extra rows/cols sliced off below).
    xp = jnp.pad(x2d.astype(p.cdt), ((0, m_pad - M), (0, p.k_pad - p.in_dim)))

    grid = (m_pad // tm, p.n_pad // p.tn, p.k_pad // p.tk)

    # Generation-aware scoped-VMEM budget; counts double-buffered tiles, the output
    # tile and the f32 accumulator scratch, plus Mosaic headroom.
    c_it = p.cdt.itemsize
    o_it = jnp.dtype(out_dtype).itemsize
    tile_bytes = (2 * tm * p.tk * c_it            # x
                  + 2 * p.tk * p.tn * c_it        # W^T
                  + 2 * tm * p.r_pad * 4          # x@A (f32)
                  + 2 * p.r_pad * p.tn * c_it     # alpha*B
                  + 2 * p.tn * 4                  # bias
                  + 2 * tm * p.tn * o_it          # output
                  + tm * p.tn * 4)                # f32 accumulator scratch
    vmem_cap = _vmem_capacity_bytes()
    gen_cap = (56 << 20) if vmem_cap <= (64 << 20) else (100 << 20)
    vmem_limit = int(min(max(int(tile_bytes * 1.4) + (8 << 20), 32 << 20), gen_cap))

    cost = pl.CostEstimate(
        flops=int(2 * M * p.in_dim * p.out_dim + 2 * M * p.r_pad * p.out_dim),
        transcendentals=0,
        bytes_accessed=int(xp.size * c_it + p.wt.size * c_it + xa.size * 4
                           + p.Bs.size * c_it + p.bias.size * 4
                           + m_pad * p.n_pad * o_it),
    )

    out = pl.pallas_call(
        _linear_lora_kernel,
        out_shape=jax.ShapeDtypeStruct((m_pad, p.n_pad), out_dtype),
        grid_spec=pltpu.PrefetchScalarGridSpec(
            num_scalar_prefetch=0,
            grid=grid,
            in_specs=[
                pl.BlockSpec((tm, p.tk), lambda i, j, k: (i, k)),       # x tile
                pl.BlockSpec((p.tk, p.tn), lambda i, j, k: (k, j)),     # W^T tile
                pl.BlockSpec((tm, p.r_pad), lambda i, j, k: (i, 0)),    # x@A (f32)
                pl.BlockSpec((p.r_pad, p.tn), lambda i, j, k: (0, j)),  # alpha*B
                pl.BlockSpec((1, p.tn), lambda i, j, k: (0, j)),        # bias
            ],
            out_specs=pl.BlockSpec((tm, p.tn), lambda i, j, k: (i, j)),
            scratch_shapes=[pltpu.VMEM((tm, p.tn), jnp.float32)],
        ),
        compiler_params=pltpu.CompilerParams(
            dimension_semantics=("parallel", "parallel", "arbitrary"),
            vmem_limit_bytes=vmem_limit,
        ),
        cost_estimate=cost,
    )(xp, p.wt, xa, p.Bs, p.bias)

    return out[:M, :p.out_dim].reshape(*orig_shape[:-1], p.out_dim)


def linear_with_lora(x, W, bias, A, B, alpha, *, compute_dtype=None,
                     tm=512, tn=None, tk=512):
    """One-shot convenience wrapper (prep + forward)."""
    params = prepare_linear_lora_params(W, bias, A, B, alpha,
                                        compute_dtype=compute_dtype, tn=tn, tk=tk)
    return linear_with_lora_forward(x, params, tm=tm)


# ----------------------------------------------------------------------------- init (matches torch defaults)

def init_linear_params(key, in_dim, out_dim, dtype=jnp.float32):
    # torch.nn.Linear default: kaiming_uniform_(W, a=sqrt(5)); bias ~ U(+-1/sqrt(in)).
    kw, kb = jax.random.split(key)
    bound = 1.0 / math.sqrt(in_dim)
    W = jax.random.uniform(kw, (out_dim, in_dim), dtype=dtype, minval=-bound, maxval=bound)
    b = jax.random.uniform(kb, (out_dim,), dtype=dtype, minval=-bound, maxval=bound)
    return W, b


def init_lora_params(key, in_dim, rank, out_dim, dtype=jnp.float32):
    # kaiming_uniform_(A, a=sqrt(5)) over (in_dim, rank): torch fan_in = rank. B = 0.
    bound = 1.0 / math.sqrt(rank)
    A = jax.random.uniform(key, (in_dim, rank), dtype=dtype, minval=-bound, maxval=bound)
    B = jnp.zeros((rank, out_dim), dtype=dtype)
    return A, B


# ----------------------------------------------------------------------------- demo / checks

if __name__ == "__main__":
    hp = jax.lax.Precision.HIGHEST

    def ref_fn(x, W, b, A, B, alpha):
        base = jnp.dot(x, W.T, precision=hp)
        lora = jnp.dot(jnp.dot(x, A, precision=hp), B, precision=hp)
        return base + b + alpha * lora

    key = jax.random.PRNGKey(0)

    # --- Test 1: module-scale shapes (batch=2, seq=8, hidden 32->32, rank=4, alpha=2).
    batch, seq, in_dim, rank, out_dim, alpha = 2, 8, 32, 4, 32, 2.0
    kx, klin, klora, kb = jax.random.split(key, 4)
    x = jax.random.normal(kx, (batch, seq, in_dim), dtype=jnp.float32)
    W, b = init_linear_params(klin, in_dim, out_dim)
    A, B = init_lora_params(klora, in_dim, rank, out_dim)

    # Faithful init (B == 0): LoRA branch is exactly zero.
    out = linear_with_lora(x, W, b, A, B, alpha)
    jax.block_until_ready(out)
    assert out.shape == (batch, seq, out_dim)
    assert jnp.allclose(out, ref_fn(x, W, b, A, B, alpha), atol=1e-4, rtol=1e-4), \
        "mismatch (zero-B case)"

    # Non-zero B: full base + LoRA path; weights prepared once, reused per call.
    B_nz = jax.random.normal(kb, (rank, out_dim), dtype=jnp.float32) * 0.1
    params = prepare_linear_lora_params(W, b, A, B_nz, alpha)
    out_nz = linear_with_lora_forward(x, params)
    jax.block_until_ready(out_nz)
    assert jnp.allclose(out_nz, ref_fn(x, W, b, A, B_nz, alpha), atol=1e-4, rtol=1e-4), \
        "mismatch (nonzero-B case)"

    # --- Test 2: non-aligned shapes, multi-tile grid incl. K accumulation axis.
    M2, in2, out2, rank2, alpha2 = 136, 200, 384, 6, 0.5
    k2x, k2lin, k2lora, k2b = jax.random.split(jax.random.PRNGKey(1), 4)
    x2 = jax.random.normal(k2x, (M2, in2), dtype=jnp.float32)
    W2, b2 = init_linear_params(k2lin, in2, out2)
    A2, _ = init_lora_params(k2lora, in2, rank2, out2)
    B2 = jax.random.normal(k2b, (rank2, out2), dtype=jnp.float32) * 0.05
    params2 = prepare_linear_lora_params(W2, b2, A2, B2, alpha2, tn=128, tk=128)
    out2_ = linear_with_lora_forward(x2, params2, tm=64)   # grid (3, 3, 2)
    jax.block_until_ready(out2_)
    assert jnp.allclose(out2_, ref_fn(x2, W2, b2, A2, B2, alpha2), atol=1e-2, rtol=1e-2), \
        "mismatch (multi-tile / K-accumulation case)"

    # --- Test 3: bf16 operand path (f32 accumulation; LoRA intermediate stays f32).
    params_bf16 = prepare_linear_lora_params(W, b, A, B_nz, alpha,
                                             compute_dtype=jnp.bfloat16)
    out_bf16 = linear_with_lora_forward(x, params_bf16)
    jax.block_until_ready(out_bf16)
    assert jnp.allclose(out_bf16, ref_fn(x, W, b, A, B_nz, alpha), atol=5e-2, rtol=5e-2), \
        "mismatch (bf16 path)"

    print("KERNEL_OK")
</pallas_src>

<mosaic_0001>
module attributes {stable_mosaic.version = 11 : i64} {
  func.func @_linear_lora_kernel(%arg0: i32, %arg1: i32, %arg2: i32, %arg3: memref<16x128xf32, #tpu.memory_space<vmem>>, %arg4: memref<128x128xf32, #tpu.memory_space<vmem>>, %arg5: memref<16x128xf32, #tpu.memory_space<vmem>>, %arg6: memref<128x128xf32, #tpu.memory_space<vmem>>, %arg7: memref<1x128xf32, #tpu.memory_space<vmem>>, %arg8: memref<16x128xf32, #tpu.memory_space<vmem>>, %arg9: memref<16x128xf32, #tpu.memory_space<vmem>>) attributes {dimension_semantics = [#tpu.dimension_semantics<parallel>, #tpu.dimension_semantics<parallel>, #tpu.dimension_semantics<arbitrary>], iteration_bounds = array<i64: 1, 1, 1>, scalar_prefetch = 0 : i64, scratch_operands = 1 : i64, tpu.core_type = #tpu.core_type<tc>, window_params = [{transform_indices = @transform_0, window_bounds = array<i64: 16, 128>}, {transform_indices = @transform_1, window_bounds = array<i64: 128, 128>}, {transform_indices = @transform_2, window_bounds = array<i64: 16, 128>}, {transform_indices = @transform_3, window_bounds = array<i64: 128, 128>}, {transform_indices = @transform_4, window_bounds = array<i64: 1, 128>}, {transform_indices = @transform_5, window_bounds = array<i64: 16, 128>}]} {
    %c0_i32 = arith.constant 0 : i32
    %0 = arith.cmpi eq, %arg2, %c0_i32 : i32
    %1 = arith.extui %0 : i1 to i32
    %c0_i32_0 = arith.constant 0 : i32
    %2 = arith.cmpi ne, %1, %c0_i32_0 : i32
    scf.if %2 {
      %cst_10 = arith.constant 0.000000e+00 : f32
      %12 = vector.broadcast %cst_10 : f32 to vector<16x128xf32>
      %c0_11 = arith.constant 0 : index
      %c0_12 = arith.constant 0 : index
      %13 = vector.load %arg9[%c0_11, %c0_12] : memref<16x128xf32, #tpu.memory_space<vmem>>, vector<16x128xf32>
      tpu.vector_store %arg9[%c0_11, %c0_12], %12 {strides = array<i32>} : memref<16x128xf32, #tpu.memory_space<vmem>>, vector<16x128xf32>,
    } else {
    }
    %c0 = arith.constant 0 : index
    %c0_1 = arith.constant 0 : index
    %3 = vector.load %arg9[%c0, %c0_1] : memref<16x128xf32, #tpu.memory_space<vmem>>, vector<16x128xf32>
    %c0_2 = arith.constant 0 : index
    %c0_3 = arith.constant 0 : index
    %4 = vector.load %arg3[%c0_2, %c0_3] : memref<16x128xf32, #tpu.memory_space<vmem>>, vector<16x128xf32>
    %c0_4 = arith.constant 0 : index
    %c0_5 = arith.constant 0 : index
    %5 = vector.load %arg4[%c0_4, %c0_5] : memref<128x128xf32, #tpu.memory_space<vmem>>, vector<128x128xf32>
    %cst = arith.constant dense<0.000000e+00> : vector<16x128xf32>
    %6 = tpu.matmul %4, %5, %cst {dimension_numbers = #tpu.dot_dimension_numbers<[1], [0], [0], [1], [0, 0, 1, 1], [], []>} : vector<16x128xf32>, vector<128x128xf32>, vector<16x128xf32> -> vector<16x128xf32>
    %7 = arith.addf %3, %6 : vector<16x128xf32>
    %c0_6 = arith.constant 0 : index
    %c0_7 = arith.constant 0 : index
    %8 = vector.load %arg9[%c0_6, %c0_7] : memref<16x128xf32, #tpu.memory_space<vmem>>, vector<16x128xf32>
    tpu.vector_store %arg9[%c0_6, %c0_7], %7 {strides = array<i32>} : memref<16x128xf32, #tpu.memory_space<vmem>>, vector<16x128xf32>,
    %c0_i32_8 = arith.constant 0 : i32
    %9 = arith.cmpi eq, %arg2, %c0_i32_8 : i32
    %10 = arith.extui %9 : i1 to i32
    %c0_i32_9 = arith.constant 0 : i32
    %11 = arith.cmpi ne, %10, %c0_i32_9 : i32
    scf.if %11 {
      %c0_10 = arith.constant 0 : index
      %c0_11 = arith.constant 0 : index
      %12 = vector.load %arg5[%c0_10, %c0_11] : memref<16x128xf32, #tpu.memory_space<vmem>>, vector<16x128xf32>
      %c0_12 = arith.constant 0 : index
      %c0_13 = arith.constant 0 : index
      %13 = vector.load %arg6[%c0_12, %c0_13] : memref<128x128xf32, #tpu.memory_space<vmem>>, vector<128x128xf32>
      %cst_14 = arith.constant dense<0.000000e+00> : vector<16x128xf32>
      %14 = tpu.matmul %12, %13, %cst_14 {dimension_numbers = #tpu.dot_dimension_numbers<[1], [0], [0], [1], [0, 0, 1, 1], [], []>} : vector<16x128xf32>, vector<128x128xf32>, vector<16x128xf32> -> vector<16x128xf32>
      %c0_15 = arith.constant 0 : index
      %c0_16 = arith.constant 0 : index
      %15 = vector.load %arg9[%c0_15, %c0_16] : memref<16x128xf32, #tpu.memory_space<vmem>>, vector<16x128xf32>
      %16 = arith.addf %15, %14 : vector<16x128xf32>
      %c0_17 = arith.constant 0 : index
      %c0_18 = arith.constant 0 : index
      %17 = vector.load %arg7[%c0_17, %c0_18] : memref<1x128xf32, #tpu.memory_space<vmem>>, vector<1x128xf32>
      %18 = vector.broadcast %17 : vector<1x128xf32> to vector<16x128xf32>
      %19 = arith.addf %16, %18 : vector<16x128xf32>
      %c0_19 = arith.constant 0 : index
      %c0_20 = arith.constant 0 : index
      %20 = vector.load %arg8[%c0_19, %c0_20] : memref<16x128xf32, #tpu.memory_space<vmem>>, vector<16x128xf32>
      tpu.vector_store %arg8[%c0_19, %c0_20], %19 {strides = array<i32>} : memref<16x128xf32, #tpu.memory_space<vmem>>, vector<16x128xf32>,
    } else {
    }
    return
  }
  func.func @transform_0(%arg0: i32, %arg1: i32, %arg2: i32) -> (i32, i32) {
    %c0_i32 = arith.constant 0 : i32
    return %arg0, %arg2 : i32, i32
  }
  func.func @transform_1(%arg0: i32, %arg1: i32, %arg2: i32) -> (i32, i32) {
    %c0_i32 = arith.constant 0 : i32
    return %arg2, %arg1 : i32, i32
  }
  func.func @transform_2(%arg0: i32, %arg1: i32, %arg2: i32) -> (i32, i32) {
    %c0_i32 = arith.constant 0 : i32
    %c0_i32_0 = arith.constant 0 : i32
    return %arg0, %c0_i32 : i32, i32
  }
  func.func @transform_3(%arg0: i32, %arg1: i32, %arg2: i32) -> (i32, i32) {
    %c0_i32 = arith.constant 0 : i32
    %c0_i32_0 = arith.constant 0 : i32
    return %c0_i32, %arg1 : i32, i32
  }
  func.func @transform_4(%arg0: i32, %arg1: i32, %arg2: i32) -> (i32, i32) {
    %c0_i32 = arith.constant 0 : i32
    %c0_i32_0 = arith.constant 0 : i32
    return %c0_i32, %arg1 : i32, i32
  }
  func.func @transform_5(%arg0: i32, %arg1: i32, %arg2: i32) -> (i32, i32) {
    %c0_i32 = arith.constant 0 : i32
    return %arg0, %arg1 : i32, i32
  }
}

</mosaic_0001>

<llo_original>
// kernel: tpu_custom_call.1
$region0: #{tpu_custom_call.1}
  #allocation0 [shape = 'u32[]', space=smem, size = 0x4, offset = 0x4, fixed_abs, tag = 'smem constant byte address 0x4 - core index']
  #allocation1 [shape = 'u32[144,128]{1,0:T(1,128)}', space=vmem, size = 0x12000, scoped, tag = 'internal scratch']
  #allocation2 [shape = 'f32[16,128]{1,0:T(8,128)}', space=vmem, size = 0x2000, scoped, tag = 'scratch operand']
  %s0 = inlined_call_operand.hbm [shape: f32[16,128], index: 0, kind: input, shape index: {}]
  %s1 = inlined_call_operand.hbm [shape: f32[128,128], index: 1, kind: input, shape index: {}]
  %s2 = inlined_call_operand.hbm [shape: f32[16,128], index: 2, kind: input, shape index: {}]
  %s3 = inlined_call_operand.hbm [shape: f32[128,128], index: 3, kind: input, shape index: {}]
  %s4 = inlined_call_operand.vmem [shape: f32[1,128], index: 4, kind: input, shape index: {}]
  %s5 = inlined_call_operand.hbm [shape: f32[16,128], index: 5, kind: output, shape index: {}]
  %s6 = sld [smem:[#allocation0]]
  $region54: #{tpu_custom_call.1} parent=0
    _
  %s8 = ssub.s32 1, %s6
  %s9 = scalar_select 0, %s8, %s6
  $region1: #{tpu_custom_call.1} parent=0
    #allocation3 [shape = 'u8[8192]{0}', space=vmem, size = 0x2000, scoped, tag = 'input window, operand 0, single buffered']
    #allocation4 [shape = 's32[1]{0}', space=sflag, size = 0x4, scoped, tag = 'scoped memory for tpu_custom_call.1']
    #allocation5 [shape = 's32[1]{0}', space=sflag, size = 0x4, scoped, tag = 'scoped memory for tpu_custom_call.1']
    #allocation6 [shape = 'u8[65536]{0}', space=vmem, size = 0x10000, scoped, tag = 'input window, operand 1, single buffered']
    #allocation7 [shape = 's32[1]{0}', space=sflag, size = 0x4, scoped, tag = 'scoped memory for tpu_custom_call.1']
    #allocation8 [shape = 'u8[8192]{0}', space=vmem, size = 0x2000, scoped, tag = 'input window, operand 2, single buffered']
    #allocation9 [shape = 'u8[65536]{0}', space=vmem, size = 0x10000, scoped, tag = 'input window, operand 3, single buffered']
    #allocation10 [shape = 's32[1]{0}', space=sflag, size = 0x4, scoped, tag = 'scoped memory for tpu_custom_call.1']
    #allocation11 [shape = 'u8[8192]{0}', space=vmem, size = 0x2000, scoped, tag = 'output window, operand 0, single buffered']
    %10 = vsyncpa [#allocation4], 0
    %11 = vsyncpa [#allocation7], 0
    %12 = vsyncpa [#allocation10], 0
    %13 = vsyncpa [#allocation5], 0
    // Predicated region
    $region2: #{tpu_custom_call.1} parent=1 // pred_check
      _
    $region3: #{tpu_custom_call.1} parent=1 // pred_check_branch
      %15 = sbr.rel (0) target = $region5
    $region4: #{tpu_custom_call.1} parent=1 // pred_region
      %s17 = ssub.s32 256, 256
      %18 = vsyncadd [#allocation4], %s17
      %s19 = sshll.u32 [#allocation3], 4
      %s20 = int_to_ptr.vmem [resolvable:$true] %s19
      %25 = dma.hbm_to_vmem [thread:$0]  %s0, 256, %s20, [#allocation4], 128, 128, 8
    $region5: #{tpu_custom_call.1} parent=1 // pred_fallthru
      _
    // Predicated region
    $region6: #{tpu_custom_call.1} parent=1 // pred_check
      _
    $region7: #{tpu_custom_call.1} parent=1 // pred_check_branch
      %27 = sbr.rel (0) target = $region9
    $region8: #{tpu_custom_call.1} parent=1 // pred_region
      %s29 = ssub.s32 2048, 2048
      %30 = vsyncadd [#allocation7], %s29
      %s31 = sshll.u32 [#allocation6], 4
      %s32 = int_to_ptr.vmem [resolvable:$true] %s31
      %37 = dma.hbm_to_vmem [thread:$0]  %s1, 2048, %s32, [#allocation7], 128, 128, 8
    $region9: #{tpu_custom_call.1} parent=1 // pred_fallthru
      _
    // Predicated region
    $region10: #{tpu_custom_call.1} parent=1 // pred_check
      _
    $region11: #{tpu_custom_call.1} parent=1 // pred_check_branch
      %39 = sbr.rel (0) target = $region13
    $region12: #{tpu_custom_call.1} parent=1 // pred_region
      %s41 = ssub.s32 256, 256
      %42 = vsyncadd [#allocation7], %s41
      %s43 = sshll.u32 [#allocation8], 4
      %s44 = int_to_ptr.vmem [resolvable:$true] %s43
      %49 = dma.hbm_to_vmem [thread:$0]  %s2, 256, %s44, [#allocation7], 128, 128, 8
    $region13: #{tpu_custom_call.1} parent=1 // pred_fallthru
      _
    // Predicated region
    $region14: #{tpu_custom_call.1} parent=1 // pred_check
      _
    $region15: #{tpu_custom_call.1} parent=1 // pred_check_branch
      %51 = sbr.rel (0) target = $region17
    $region16: #{tpu_custom_call.1} parent=1 // pred_region
      %s53 = ssub.s32 2048, 2048
      %54 = vsyncadd [#allocation10], %s53
      %s55 = sshll.u32 [#allocation9], 4
      %s56 = int_to_ptr.vmem [resolvable:$true] %s55
      %61 = dma.hbm_to_vmem [thread:$0]  %s3, 2048, %s56, [#allocation10], 128, 128, 8
    $region17: #{tpu_custom_call.1} parent=1 // pred_fallthru
      _
    // Predicated region
    $region18: #{tpu_custom_call.1} parent=1 // pred_check
      _
    $region19: #{tpu_custom_call.1} parent=1 // pred_check_branch
      %63 = sbr.rel (0) target = $region21
    $region20: #{tpu_custom_call.1} parent=1 // pred_region
      _
    $region21: #{tpu_custom_call.1} parent=1 // pred_fallthru
      _
    // Predicated region
    $region22: #{tpu_custom_call.1} parent=1 // pred_check
      _
    $region23: #{tpu_custom_call.1} parent=1 // pred_check_branch
      %65 = sbr.rel (0) target = $region25
    $region24: #{tpu_custom_call.1} parent=1 // pred_region
      %66 = dma.done [#allocation4], 256
    $region25: #{tpu_custom_call.1} parent=1 // pred_fallthru
      _
    // Predicated region
    $region26: #{tpu_custom_call.1} parent=1 // pred_check
      _
    $region27: #{tpu_custom_call.1} parent=1 // pred_check_branch
      %68 = sbr.rel (0) target = $region29
    $region28: #{tpu_custom_call.1} parent=1 // pred_region
      %69 = dma.done [#allocation7], 2048
    $region29: #{tpu_custom_call.1} parent=1 // pred_fallthru
      _
    // Predicated region
    $region30: #{tpu_custom_call.1} parent=1 // pred_check
      _
    $region31: #{tpu_custom_call.1} parent=1 // pred_check_branch
      %71 = sbr.rel (0) target = $region33
    $region32: #{tpu_custom_call.1} parent=1 // pred_region
      %72 = dma.done [#allocation7], 256
    $region33: #{tpu_custom_call.1} parent=1 // pred_fallthru
      _
    // Predicated region
    $region34: #{tpu_custom_call.1} parent=1 // pred_check
      _
    $region35: #{tpu_custom_call.1} parent=1 // pred_check_branch
      %74 = sbr.rel (0) target = $region37
    $region36: #{tpu_custom_call.1} parent=1 // pred_region
      %75 = dma.done [#allocation10], 2048
    $region37: #{tpu_custom_call.1} parent=1 // pred_fallthru
      _
    %p76 = scmp.eq.s32.totalorder 0, 0
    // Predicated region
    $region38: #{tpu_custom_call.1} parent=1 // pred_check
      %p77 = pneg %p76
    $region39: #{tpu_custom_call.1} parent=1 // pred_check_branch
      %79 = sbr.rel (%p77) target = $region41
    $region40: #{tpu_custom_call.1} parent=1 // pred_region
      %80 = vst [vmem:[#allocation2] sm:$0xff] 0.0
      %81 = vst [vmem:[#allocation2 + $0x8] sm:$0xff] 0.0
    $region41: #{tpu_custom_call.1} parent=1 // pred_fallthru
      _
    %v82 = vld [vmem:[#allocation2] sm:$0xff]
    %v83 = vld [vmem:[#allocation2 + $0x8] sm:$0xff]
    %v84 = vld [vmem:[#allocation3] sm:$0xff]
    %v85 = vld [vmem:[#allocation3 + $0x8] sm:$0xff]
    %v86 = vld [vmem:[#allocation6] sm:$0xff]
    %v87 = vld [vmem:[#allocation6 + $0x8] sm:$0xff]
    %v88 = vld [vmem:[#allocation6 + $0x10] sm:$0xff]
    %v89 = vld [vmem:[#allocation6 + $0x18] sm:$0xff]
    %v90 = vld [vmem:[#allocation6 + $0x20] sm:$0xff]
    %v91 = vld [vmem:[#allocation6 + $0x28] sm:$0xff]
    %v92 = vld [vmem:[#allocation6 + $0x30] sm:$0xff]
    %v93 = vld [vmem:[#allocation6 + $0x38] sm:$0xff]
    %v94 = vld [vmem:[#allocation6 + $0x40] sm:$0xff]
    %v95 = vld [vmem:[#allocation6 + $0x48] sm:$0xff]
    %v96 = vld [vmem:[#allocation6 + $0x50] sm:$0xff]
    %v97 = vld [vmem:[#allocation6 + $0x58] sm:$0xff]
    %v98 = vld [vmem:[#allocation6 + $0x60] sm:$0xff]
    %v99 = vld [vmem:[#allocation6 + $0x68] sm:$0xff]
    %v100 = vld [vmem:[#allocation6 + $0x70] sm:$0xff]
    %v101 = vld [vmem:[#allocation6 + $0x78] sm:$0xff]
    %102 = vmatprep.subr.mxu0 0.0
    %103 = vmatpush1.msra.mxu0 %v86
    %104 = vmatprep.subr.mxu0 0.0
    %105 = vmatpush1.msra.mxu0 %v87
    %106 = vmatprep.subr.mxu0 0.0
    %107 = vmatpush1.msra.mxu0 %v88
    %108 = vmatprep.subr.mxu0 0.0
    %109 = vmatpush1.msra.mxu0 %v89
    %110 = vmatprep.subr.mxu0 0.0
    %111 = vmatpush1.msra.mxu0 %v90
    %112 = vmatprep.subr.mxu0 0.0
    %113 = vmatpush1.msra.mxu0 %v91
    %114 = vmatprep.subr.mxu0 0.0
    %115 = vmatpush1.msra.mxu0 %v92
    %116 = vmatprep.subr.mxu0 0.0
    %117 = vmatpush1.msra.mxu0 %v93
    %118 = vmatprep.subr.mxu0 0.0
    %119 = vmatpush1.msra.mxu0 %v94
    %120 = vmatprep.subr.mxu0 0.0
    %121 = vmatpush1.msra.mxu0 %v95
    %122 = vmatprep.subr.mxu0 0.0
    %123 = vmatpush1.msra.mxu0 %v96
    %124 = vmatprep.subr.mxu0 0.0
    %125 = vmatpush1.msra.mxu0 %v97
    %126 = vmatprep.subr.mxu0 0.0
    %127 = vmatpush1.msra.mxu0 %v98
    %128 = vmatprep.subr.mxu0 0.0
    %129 = vmatpush1.msra.mxu0 %v99
    %130 = vmatprep.subr.mxu0 0.0
    %131 = vmatpush1.msra.mxu0 %v100
    %132 = vmatprep.subr.mxu0 0.0
    %133 = vmatpush1.msra.mxu0 %v101
    %134 = vmatprep.subr.mxu0 0.0
    %135 = vmatpush1.msra.mxu0 0.0
    %136 = vmatprep.subr.mxu0 0.0
    %137 = vmatpush1.msra.mxu0 0.0
    %138 = vmatprep.subr.mxu0 0.0
    %139 = vmatpush1.msra.mxu0 0.0
    %140 = vmatprep.subr.mxu0 0.0
    %141 = vmatpush1.msra.mxu0 0.0
    %142 = vmatprep.subr.mxu0 0.0
    %143 = vmatpush1.msra.mxu0 0.0
    %144 = vmatprep.subr.mxu0 0.0
    %145 = vmatpush1.msra.mxu0 0.0
    %146 = vmatprep.subr.mxu0 0.0
    %147 = vmatpush1.msra.mxu0 0.0
    %148 = vmatprep.subr.mxu0 0.0
    %149 = vmatpush1.msra.mxu0 0.0
    %150 = vmatprep.subr.mxu0 0.0
    %151 = vmatpush1.msra.mxu0 0.0
    %152 = vmatprep.subr.mxu0 0.0
    %153 = vmatpush1.msra.mxu0 0.0
    %154 = vmatprep.subr.mxu0 0.0
    %155 = vmatpush1.msra.mxu0 0.0
    %156 = vmatprep.subr.mxu0 0.0
    %157 = vmatpush1.msra.mxu0 0.0
    %158 = vmatprep.subr.mxu0 0.0
    %159 = vmatpush1.msra.mxu0 0.0
    %160 = vmatprep.subr.mxu0 0.0
    %161 = vmatpush1.msra.mxu0 0.0
    %162 = vmatprep.subr.mxu0 0.0
    %163 = vmatpush1.msra.mxu0 0.0
    %164 = vmatprep.subr.mxu0 0.0
    %165 = vmatpush1.msra.mxu0 0.0
    %166 = vmatprep.mubr.f32.mxu0 0.0
    %167 = vmatmul.mubr.f32.gmra.mrb[0].mxu0 %v84
    %v168 = vpop.f32.mrb[0].mxu0
    %v169 = vadd.f32 0.0, %v168
    %v170 = vpop.f32.mrb[0].mxu0
    %171 = vmatprep.mubr.f32.mxu0 0.0
    %172 = vmatmul.mubr.f32.gmra.mrb[0].mxu0 %v85
    %v173 = vpop.f32.mrb[0].mxu0
    %v174 = vadd.f32 0.0, %v173
    %v175 = vpop.f32.mrb[0].mxu0
    %176 = vdwg.mxu0
    %v177 = vadd.f32 %v82, %v169
    %v178 = vadd.f32 %v83, %v174
    %179 = vst [vmem:[#allocation2] sm:$0xff] %v177
    %180 = vst [vmem:[#allocation2 + $0x8] sm:$0xff] %v178
    // Predicated region
    $region42: #{tpu_custom_call.1} parent=1 // pred_check
      %p181 = pneg %p76
    $region43: #{tpu_custom_call.1} parent=1 // pred_check_branch
      %183 = sbr.rel (%p181) target = $region45
    $region44: #{tpu_custom_call.1} parent=1 // pred_region
      %v184 = vld [vmem:[#allocation8] sm:$0xff]
      %v185 = vld [vmem:[#allocation8 + $0x8] sm:$0xff]
      %v186 = vld [vmem:[#allocation9] sm:$0xff]
      %v187 = vld [vmem:[#allocation9 + $0x8] sm:$0xff]
      %v188 = vld [vmem:[#allocation9 + $0x10] sm:$0xff]
      %v189 = vld [vmem:[#allocation9 + $0x18] sm:$0xff]
      %v190 = vld [vmem:[#allocation9 + $0x20] sm:$0xff]
      %v191 = vld [vmem:[#allocation9 + $0x28] sm:$0xff]
      %v192 = vld [vmem:[#allocation9 + $0x30] sm:$0xff]
      %v193 = vld [vmem:[#allocation9 + $0x38] sm:$0xff]
      %v194 = vld [vmem:[#allocation9 + $0x40] sm:$0xff]
      %v195 = vld [vmem:[#allocation9 + $0x48] sm:$0xff]
      %v196 = vld [vmem:[#allocation9 + $0x50] sm:$0xff]
      %v197 = vld [vmem:[#allocation9 + $0x58] sm:$0xff]
      %v198 = vld [vmem:[#allocation9 + $0x60] sm:$0xff]
      %v199 = vld [vmem:[#allocation9 + $0x68] sm:$0xff]
      %v200 = vld [vmem:[#allocation9 + $0x70] sm:$0xff]
      %v201 = vld [vmem:[#allocation9 + $0x78] sm:$0xff]
      %202 = vmatprep.subr.mxu0 0.0
      %203 = vmatpush1.msra.mxu0 %v186
      %204 = vmatprep.subr.mxu0 0.0
      %205 = vmatpush1.msra.mxu0 %v187
      %206 = vmatprep.subr.mxu0 0.0
      %207 = vmatpush1.msra.mxu0 %v188
      %208 = vmatprep.subr.mxu0 0.0
      %209 = vmatpush1.msra.mxu0 %v189
      %210 = vmatprep.subr.mxu0 0.0
      %211 = vmatpush1.msra.mxu0 %v190
      %212 = vmatprep.subr.mxu0 0.0
      %213 = vmatpush1.msra.mxu0 %v191
      %214 = vmatprep.subr.mxu0 0.0
      %215 = vmatpush1.msra.mxu0 %v192
      %216 = vmatprep.subr.mxu0 0.0
      %217 = vmatpush1.msra.mxu0 %v193
      %218 = vmatprep.subr.mxu0 0.0
      %219 = vmatpush1.msra.mxu0 %v194
      %220 = vmatprep.subr.mxu0 0.0
      %221 = vmatpush1.msra.mxu0 %v195
      %222 = vmatprep.subr.mxu0 0.0
      %223 = vmatpush1.msra.mxu0 %v196
      %224 = vmatprep.subr.mxu0 0.0
      %225 = vmatpush1.msra.mxu0 %v197
      %226 = vmatprep.subr.mxu0 0.0
      %227 = vmatpush1.msra.mxu0 %v198
      %228 = vmatprep.subr.mxu0 0.0
      %229 = vmatpush1.msra.mxu0 %v199
      %230 = vmatprep.subr.mxu0 0.0
      %231 = vmatpush1.msra.mxu0 %v200
      %232 = vmatprep.subr.mxu0 0.0
      %233 = vmatpush1.msra.mxu0 %v201
      %234 = vmatprep.subr.mxu0 0.0
      %235 = vmatpush1.msra.mxu0 0.0
      %236 = vmatprep.subr.mxu0 0.0
      %237 = vmatpush1.msra.mxu0 0.0
      %238 = vmatprep.subr.mxu0 0.0
      %239 = vmatpush1.msra.mxu0 0.0
      %240 = vmatprep.subr.mxu0 0.0
      %241 = vmatpush1.msra.mxu0 0.0
      %242 = vmatprep.subr.mxu0 0.0
      %243 = vmatpush1.msra.mxu0 0.0
      %244 = vmatprep.subr.mxu0 0.0
      %245 = vmatpush1.msra.mxu0 0.0
      %246 = vmatprep.subr.mxu0 0.0
      %247 = vmatpush1.msra.mxu0 0.0
      %248 = vmatprep.subr.mxu0 0.0
      %249 = vmatpush1.msra.mxu0 0.0
      %250 = vmatprep.subr.mxu0 0.0
      %251 = vmatpush1.msra.mxu0 0.0
      %252 = vmatprep.subr.mxu0 0.0
      %253 = vmatpush1.msra.mxu0 0.0
      %254 = vmatprep.subr.mxu0 0.0
      %255 = vmatpush1.msra.mxu0 0.0
      %256 = vmatprep.subr.mxu0 0.0
      %257 = vmatpush1.msra.mxu0 0.0
      %258 = vmatprep.subr.mxu0 0.0
      %259 = vmatpush1.msra.mxu0 0.0
      %260 = vmatprep.subr.mxu0 0.0
      %261 = vmatpush1.msra.mxu0 0.0
      %262 = vmatprep.subr.mxu0 0.0
      %263 = vmatpush1.msra.mxu0 0.0
      %264 = vmatprep.subr.mxu0 0.0
      %265 = vmatpush1.msra.mxu0 0.0
      %266 = vmatprep.mubr.f32.mxu0 0.0
      %267 = vmatmul.mubr.f32.gmra.mrb[0].mxu0 %v184
      %v268 = vpop.f32.mrb[0].mxu0
      %v269 = vadd.f32 0.0, %v268
      %v270 = vpop.f32.mrb[0].mxu0
      %271 = vmatprep.mubr.f32.mxu0 0.0
      %272 = vmatmul.mubr.f32.gmra.mrb[0].mxu0 %v185
      %v273 = vpop.f32.mrb[0].mxu0
      %v274 = vadd.f32 0.0, %v273
      %v275 = vpop.f32.mrb[0].mxu0
      %276 = vdwg.mxu0
      %v277 = vld [vmem:[#allocation2] sm:$0xff]
      %v278 = vld [vmem:[#allocation2 + $0x8] sm:$0xff]
      %v279 = vadd.f32 %v277, %v269
      %v280 = vadd.f32 %v278, %v274
      %v281 = vld [vmem:[%s4] sm:$0x1]
      %v283 = vlaneseq
      %v284 = vshrl.u32 %v283, 7
      %v285 = vsub.s32 0, %v284
      %v286 = vrot.slane %v281, %v285
      %v288 = vadd.f32 %v279, %v286
      %v289 = vadd.f32 %v280, %v286
      %290 = vst [vmem:[#allocation11] sm:$0xff] %v288
      %291 = vst [vmem:[#allocation11 + $0x8] sm:$0xff] %v289
    $region45: #{tpu_custom_call.1} parent=1 // pred_fallthru
      _
    // Predicated region
    $region46: #{tpu_custom_call.1} parent=1 // pred_check
      _
    $region47: #{tpu_custom_call.1} parent=1 // pred_check_branch
      %293 = sbr.rel (0) target = $region49
    $region48: #{tpu_custom_call.1} parent=1 // pred_region
      %s295 = ssub.s32 256, 256
      %296 = vsyncadd [#allocation5], %s295
      %s297 = sshll.u32 [#allocation11], 4
      %s298 = int_to_ptr.vmem [resolvable:$true] %s297
      %303 = dma.vmem_to_hbm [thread:$0]  %s298, 256, %s5, [#allocation5], 128, 128, 8
    $region49: #{tpu_custom_call.1} parent=1 // pred_fallthru
      _
    // Predicated region
    $region50: #{tpu_custom_call.1} parent=1 // pred_check
      _
    $region51: #{tpu_custom_call.1} parent=1 // pred_check_branch
      %305 = sbr.rel (0) target = $region53
    $region52: #{tpu_custom_call.1} parent=1 // pred_region
      %306 = dma.done [#allocation5], 256
    $region53: #{tpu_custom_call.1} parent=1 // pred_fallthru
      _
    %307 = vsyncpa [#allocation4], 1
    %308 = vsyncpa [#allocation7], 1
    %309 = vsyncpa [#allocation10], 1
    %310 = vsyncpa [#allocation5], 1

</llo_original>
